<compile_context>
chip_gen: v7x
topology: tpu7x:2x2x1
jax: 0.10.0
libtpu: 0.0.40
codegen_flags: <defaults>
</compile_context>

<pallas_src>
import functools

import jax
import jax.numpy as jnp
from jax.experimental import pallas as pl
from jax.experimental.pallas import tpu as pltpu


_VMEM_LIMIT = 48 * 1024 * 1024        # safe on v7x (64 MiB) and v5e/v6e (128 MiB)
_RESIDENT_W_BYTES = 8 * 1024 * 1024   # hold the whole weight in VMEM below this
_SMALL_FEATURE_LIMIT = 16


def _round_up(v, m):
    return ((v + m - 1) // m) * m


def _pick_batch_tile(n, cap=512):
    """Batch tile: <= cap, multiple of 8, and >= 2 grid blocks whenever there
    is enough work (n > 16) so both v7x TensorCores are used."""
    if n > cap:
        return cap
    if n > 16:
        return min(n, _round_up((n + 1) // 2, 8))
    return n


# ----------------------------------------------------------------------------
# Resident-weight MXU path: the whole (K, M) weight lives in VMEM (constant
# index map -> DMA'd once); grid tiles only the batch dim.
# ----------------------------------------------------------------------------
def _linear_resident_kernel(x_ref, w_ref, b_ref, o_ref):
    acc = jnp.dot(x_ref[...], w_ref[...], preferred_element_type=jnp.float32)
    o_ref[...] = (acc + b_ref[...]).astype(o_ref.dtype)


def _linear_resident(x, w_t, b2):
    N, K = x.shape
    M = w_t.shape[1]
    tn = _pick_batch_tile(N)
    return pl.pallas_call(
        _linear_resident_kernel,
        out_shape=jax.ShapeDtypeStruct((N, M), x.dtype),
        grid=(pl.cdiv(N, tn),),
        in_specs=[
            pl.BlockSpec((tn, K), lambda i: (i, 0)),
            pl.BlockSpec((K, M), lambda i: (0, 0)),   # resident: fetched once
            pl.BlockSpec((1, M), lambda i: (0, 0)),
        ],
        out_specs=pl.BlockSpec((tn, M), lambda i: (i, 0)),
        compiler_params=pltpu.CompilerParams(
            dimension_semantics=("parallel",),
            vmem_limit_bytes=_VMEM_LIMIT,
        ),
    )(x, w_t, b2)


# ----------------------------------------------------------------------------
# General (N, M, K)-tiled MXU path with an f32 VMEM accumulator. The K tail is
# masked in-kernel (no per-call activation padding).
# ----------------------------------------------------------------------------
def _linear_tiled_kernel(x_ref, w_ref, b_ref, o_ref, acc_ref, *, k_rem, tk):
    k = pl.program_id(2)
    n_k = pl.num_programs(2)

    @pl.when(k == 0)
    def _init():
        acc_ref[...] = jnp.zeros_like(acc_ref)

    x = x_ref[...]
    w = w_ref[...]
    if k_rem:  # static: K % tk != 0 -> zero the out-of-bounds tail on last step
        valid = jnp.where(k == n_k - 1, k_rem, tk)
        col = jax.lax.broadcasted_iota(jnp.int32, x.shape, 1)
        row = jax.lax.broadcasted_iota(jnp.int32, w.shape, 0)
        x = jnp.where(col < valid, x, jnp.zeros_like(x))
        w = jnp.where(row < valid, w, jnp.zeros_like(w))

    acc_ref[...] += jnp.dot(x, w, preferred_element_type=jnp.float32)

    @pl.when(k == n_k - 1)
    def _finalize():
        o_ref[...] = (acc_ref[...] + b_ref[...]).astype(o_ref.dtype)


def _linear_tiled(x, w_t, b2, tk=None):
    """x: (N, K), w_t: (K, M), b2: (1, M) -> (N, M)."""
    N, K = x.shape
    M = w_t.shape[1]

    tn = N if N <= 512 else 512
    tm = M if M <= 512 else 512
    # Guarantee >= 2 parallel (i, j) blocks when possible (v7x megacore).
    if pl.cdiv(N, tn) * pl.cdiv(M, tm) < 2 and N > 16:
        tn = min(N, _round_up((N + 1) // 2, 8))

    if tk is None:
        if K <= 2048:
            tk = K
        else:
            tk = next((c for c in (2048, 1024, 512, 256, 128) if K % c == 0), 512)
    k_rem = K % tk

    kernel = functools.partial(_linear_tiled_kernel, k_rem=k_rem, tk=tk)

    return pl.pallas_call(
        kernel,
        out_shape=jax.ShapeDtypeStruct((N, M), x.dtype),
        grid_spec=pltpu.PrefetchScalarGridSpec(
            num_scalar_prefetch=0,
            grid=(pl.cdiv(N, tn), pl.cdiv(M, tm), pl.cdiv(K, tk)),
            in_specs=[
                pl.BlockSpec((tn, tk), lambda i, j, k: (i, k)),
                pl.BlockSpec((tk, tm), lambda i, j, k: (k, j)),
                pl.BlockSpec((1, tm), lambda i, j, k: (0, j)),
            ],
            out_specs=pl.BlockSpec((tn, tm), lambda i, j, k: (i, j)),
            scratch_shapes=[pltpu.VMEM((tn, tm), jnp.float32)],
        ),
        compiler_params=pltpu.CompilerParams(
            dimension_semantics=("parallel", "parallel", "arbitrary"),
            vmem_limit_bytes=_VMEM_LIMIT,
        ),
    )(x, w_t, b2)


# ----------------------------------------------------------------------------
# Degenerate 1x1 linear (the spec's module): lane-dense y = x * w + b with the
# batch dim mapped onto the 128-lane axis.
# ----------------------------------------------------------------------------
def _affine_scalar_kernel(x_ref, w_ref, b_ref, o_ref):
    o_ref[...] = (x_ref[...] * w_ref[...] + b_ref[...]).astype(o_ref.dtype)


def _linear_scalar(x, w_t, b2):
    N = x.shape[0]
    lanes = 128
    n_pad = _round_up(max(N, 1), lanes)
    xf = jnp.reshape(x, (-1,))
    if n_pad != N:
        xf = jnp.pad(xf, (0, n_pad - N))
    rows = n_pad // lanes
    x2 = xf.reshape(rows, lanes)
    tr = rows if rows <= 4096 else 4096
    out2 = pl.pallas_call(
        _affine_scalar_kernel,
        out_shape=jax.ShapeDtypeStruct((rows, lanes), x.dtype),
        grid=(pl.cdiv(rows, tr),),
        in_specs=[
            pl.BlockSpec((tr, lanes), lambda i: (i, 0)),
            pl.BlockSpec((1, 1), lambda i: (0, 0)),
            pl.BlockSpec((1, 1), lambda i: (0, 0)),
        ],
        out_specs=pl.BlockSpec((tr, lanes), lambda i: (i, 0)),
        compiler_params=pltpu.CompilerParams(
            dimension_semantics=("parallel",)),
    )(x2, w_t, b2)
    return out2.reshape(-1)[:N].reshape(N, 1)


# ----------------------------------------------------------------------------
# Small-feature VPU path (K, M <= 16 but not the 1x1 case): broadcast MAC loop,
# tiling only the batch dim with large blocks.
# ----------------------------------------------------------------------------
def _linear_small_kernel(x_ref, w_ref, b_ref, o_ref):
    x = x_ref[...].astype(jnp.float32)
    w = w_ref[...].astype(jnp.float32)
    acc = jnp.zeros(o_ref.shape, jnp.float32)
    for k in range(x.shape[1]):  # K is tiny and static
        acc = acc + x[:, k:k + 1] * w[k:k + 1, :]
    o_ref[...] = (acc + b_ref[...]).astype(o_ref.dtype)


def _linear_small(x, w_t, b2):
    N, K = x.shape
    M = w_t.shape[1]
    tn = N if N <= 4096 else 4096
    return pl.pallas_call(
        _linear_small_kernel,
        out_shape=jax.ShapeDtypeStruct((N, M), x.dtype),
        grid=(pl.cdiv(N, tn),),
        in_specs=[
            pl.BlockSpec((tn, K), lambda i: (i, 0)),
            pl.BlockSpec((K, M), lambda i: (0, 0)),
            pl.BlockSpec((1, M), lambda i: (0, 0)),
        ],
        out_specs=pl.BlockSpec((tn, M), lambda i: (i, 0)),
        compiler_params=pltpu.CompilerParams(
            dimension_semantics=("parallel",)),
    )(x, w_t, b2)


def linear_forward(x, w_t, bias):
    """nn.Linear forward; the weight is stored pre-transposed as (K, M)."""
    _, K = x.shape
    M = w_t.shape[1]
    b2 = bias.reshape(1, M)
    if K == 1 and M == 1:
        return _linear_scalar(x, w_t, b2)
    if K <= _SMALL_FEATURE_LIMIT and M <= _SMALL_FEATURE_LIMIT:
        return _linear_small(x, w_t, b2)
    w_bytes = K * M * w_t.dtype.itemsize
    if K <= 2048 and M <= 2048 and w_bytes <= _RESIDENT_W_BYTES:
        return _linear_resident(x, w_t, b2)
    return _linear_tiled(x, w_t, b2)


_forward = jax.jit(linear_forward)


class LinearRegression:
    """JAX/Pallas port of the PyTorch LinearRegression module."""

    def __init__(self, input_size, output_size, key, compute_dtype=jnp.float32):
        kw, kb = jax.random.split(key)
        bound = 1.0 / (input_size ** 0.5)  # torch nn.Linear default init range
        self.weight = jax.random.uniform(
            kw, (output_size, input_size), jnp.float32, -bound, bound)
        self.bias = jax.random.uniform(
            kb, (output_size,), jnp.float32, -bound, bound)
        self.compute_dtype = compute_dtype
        # Pre-transpose (and optionally down-cast, e.g. bf16 on v6e/v7x) once,
        # so no per-call transpose/pad of the weight hits HBM.
        self.w_t = jnp.asarray(self.weight.T).astype(compute_dtype)

    def __call__(self, x):
        return _forward(x.astype(self.compute_dtype), self.w_t, self.bias)


if __name__ == "__main__":
    key = jax.random.PRNGKey(0)
    (k_param, k_x, k_x2, k_w2, k_b2,
     k_x3, k_w3, k_b3, k_x4, k_w4, k_b4) = jax.random.split(key, 11)

    # 1) The spec's module: input_size = output_size = 1 (lane-dense scalar path).
    model = LinearRegression(1, 1, k_param)
    x = jax.random.normal(k_x, (8, 1), jnp.float32)
    out = jax.block_until_ready(model(x))
    ref = x @ model.weight.T + model.bias
    assert out.shape == (8, 1)
    assert jnp.allclose(out, ref, atol=1e-5), "scalar-path mismatch"

    # 2) Small-feature VPU path.
    x4 = jax.random.normal(k_x4, (64, 8), jnp.float32)
    w4_t = jax.random.normal(k_w4, (8, 4), jnp.float32) * 0.1
    b4 = jax.random.normal(k_b4, (4,), jnp.float32)
    out4 = jax.block_until_ready(_forward(x4, w4_t, b4))
    assert jnp.allclose(out4, x4 @ w4_t + b4, atol=1e-4, rtol=1e-4), \
        "small-path mismatch"

    # 3) Resident-weight MXU path (f32), plus its bf16 variant.
    x2 = jax.random.normal(k_x2, (256, 256), jnp.float32)
    w2_t = jax.random.normal(k_w2, (256, 128), jnp.float32) * 0.05
    b2 = jax.random.normal(k_b2, (128,), jnp.float32)
    out2 = jax.block_until_ready(_forward(x2, w2_t, b2))
    ref2 = x2 @ w2_t + b2
    assert jnp.allclose(out2, ref2, atol=1e-3, rtol=1e-3), "resident-path mismatch"

    out2b = jax.block_until_ready(
        _forward(x2.astype(jnp.bfloat16), w2_t.astype(jnp.bfloat16), b2))
    ref2b = (x2.astype(jnp.bfloat16).astype(jnp.float32)
             @ w2_t.astype(jnp.bfloat16).astype(jnp.float32) + b2)
    assert jnp.allclose(out2b.astype(jnp.float32), ref2b, atol=5e-2, rtol=5e-2), \
        "bf16 resident-path mismatch"

    # 4) General K-tiled path with a ragged K tail (small forced tk for coverage
    #    of the in-kernel tail masking; no per-call activation padding).
    x3 = jax.random.normal(k_x3, (128, 320), jnp.float32)
    w3_t = jax.random.normal(k_w3, (320, 128), jnp.float32) * 0.05
    b3 = jax.random.normal(k_b3, (128,), jnp.float32)
    out3 = jax.block_until_ready(_linear_tiled(x3, w3_t, b3.reshape(1, -1), tk=128))
    assert jnp.allclose(out3, x3 @ w3_t + b3, atol=1e-3, rtol=1e-3), \
        "tiled-path mismatch"

    print("KERNEL_OK")
</pallas_src>

<mosaic_0001>
module attributes {stable_mosaic.version = 11 : i64} {
  func.func @_affine_scalar_kernel(%arg0: i32, %arg1: memref<1x128xf32, #tpu.memory_space<vmem>>, %arg2: memref<1x1xf32, #tpu.memory_space<vmem>>, %arg3: memref<1x1xf32, #tpu.memory_space<vmem>>, %arg4: memref<1x128xf32, #tpu.memory_space<vmem>>) attributes {dimension_semantics = [#tpu.dimension_semantics<parallel>], iteration_bounds = array<i64: 1>, scalar_prefetch = 0 : i64, scratch_operands = 0 : i64, tpu.core_type = #tpu.core_type<tc>, window_params = [{transform_indices = @transform_0, window_bounds = array<i64: 1, 128>}, {pipeline_mode = #tpu.pipeline_mode<synchronous>, transform_indices = @transform_1, window_bounds = array<i64: 1, 1>}, {pipeline_mode = #tpu.pipeline_mode<synchronous>, transform_indices = @transform_2, window_bounds = array<i64: 1, 1>}, {transform_indices = @transform_3, window_bounds = array<i64: 1, 128>}]} {
    %c0 = arith.constant 0 : index
    %c0_0 = arith.constant 0 : index
    %0 = vector.load %arg1[%c0, %c0_0] : memref<1x128xf32, #tpu.memory_space<vmem>>, vector<1x128xf32>
    %c0_1 = arith.constant 0 : index
    %c0_2 = arith.constant 0 : index
    %1 = vector.load %arg2[%c0_1, %c0_2] : memref<1x1xf32, #tpu.memory_space<vmem>>, vector<1x1xf32>
    %2 = vector.broadcast %1 : vector<1x1xf32> to vector<1x128xf32>
    %3 = arith.mulf %0, %2 : vector<1x128xf32>
    %c0_3 = arith.constant 0 : index
    %c0_4 = arith.constant 0 : index
    %4 = vector.load %arg3[%c0_3, %c0_4] : memref<1x1xf32, #tpu.memory_space<vmem>>, vector<1x1xf32>
    %5 = vector.broadcast %4 : vector<1x1xf32> to vector<1x128xf32>
    %6 = arith.addf %3, %5 : vector<1x128xf32>
    %c0_5 = arith.constant 0 : index
    %c0_6 = arith.constant 0 : index
    %7 = vector.load %arg4[%c0_5, %c0_6] : memref<1x128xf32, #tpu.memory_space<vmem>>, vector<1x128xf32>
    tpu.vector_store %arg4[%c0_5, %c0_6], %6 {strides = array<i32>} : memref<1x128xf32, #tpu.memory_space<vmem>>, vector<1x128xf32>,
    return
  }
  func.func @transform_0(%arg0: i32) -> (i32, i32) {
    %c0_i32 = arith.constant 0 : i32
    %c0_i32_0 = arith.constant 0 : i32
    return %arg0, %c0_i32 : i32, i32
  }
  func.func @transform_1(%arg0: i32) -> (i32, i32) {
    %c0_i32 = arith.constant 0 : i32
    %c0_i32_0 = arith.constant 0 : i32
    %c0_i32_1 = arith.constant 0 : i32
    return %c0_i32, %c0_i32_0 : i32, i32
  }
  func.func @transform_2(%arg0: i32) -> (i32, i32) {
    %c0_i32 = arith.constant 0 : i32
    %c0_i32_0 = arith.constant 0 : i32
    %c0_i32_1 = arith.constant 0 : i32
    return %c0_i32, %c0_i32_0 : i32, i32
  }
  func.func @transform_3(%arg0: i32) -> (i32, i32) {
    %c0_i32 = arith.constant 0 : i32
    %c0_i32_0 = arith.constant 0 : i32
    return %arg0, %c0_i32 : i32, i32
  }
}

</mosaic_0001>

<llo_original>
// kernel: linear_forward.1
$region0: #{linear_forward.1}
  #allocation0 [shape = 'u32[]', space=smem, size = 0x4, offset = 0x4, fixed_abs, tag = 'smem constant byte address 0x4 - core index']
  #allocation1 [shape = 'u32[144,128]{1,0:T(1,128)}', space=vmem, size = 0x12000, scoped, tag = 'internal scratch']
  #allocation2 [shape = 'f32[1,1]{1,0:T(1,128)S(1)}', space=vmem, size = 0x200, scoped, tag = 'scoped memory for linear_forward.1']
  #allocation3 [shape = 'f32[1,1]{1,0:T(1,128)S(1)}', space=vmem, size = 0x200, scoped, tag = 'scoped memory for linear_forward.1']
  %s0 = inlined_call_operand.vmem [shape: f32[1,128], index: 0, kind: input, shape index: {}]
  %s1 = inlined_call_operand.<no memory space> [shape: f32[1,1], index: 1, kind: input, shape index: {}]
  %s2 = inlined_call_operand.<no memory space> [shape: f32[1,1], index: 2, kind: input, shape index: {}]
  %s3 = inlined_call_operand.vmem [shape: f32[1,128], index: 3, kind: output, shape index: {}]
  %s4 = sld [smem:[#allocation0]]
  $region22: #{linear_forward.1} parent=0
    _
  %s6 = ssub.s32 1, %s4
  %s7 = scalar_select 0, %s6, %s4
  %v8 = vstv %s1
  %9 = vst [vmem:[#allocation2] sm:$0x1] %v8
  %v10 = vstv %s2
  %11 = vst [vmem:[#allocation3] sm:$0x1] %v10
  // Predicated region
  $region2: #{linear_forward.1} parent=0 // pred_check
    _
  $region3: #{linear_forward.1} parent=0 // pred_check_branch
    %13 = sbr.rel (0) target = $region5
  $region4: #{linear_forward.1} parent=0 // pred_region
    _
  $region5: #{linear_forward.1} parent=0 // pred_fallthru
    _
  // Predicated region
  $region6: #{linear_forward.1} parent=0 // pred_check
    _
  $region7: #{linear_forward.1} parent=0 // pred_check_branch
    %15 = sbr.rel (0) target = $region9
  $region8: #{linear_forward.1} parent=0 // pred_region
    _
  $region9: #{linear_forward.1} parent=0 // pred_fallthru
    _
  // Predicated region
  $region10: #{linear_forward.1} parent=0 // pred_check
    _
  $region11: #{linear_forward.1} parent=0 // pred_check_branch
    %17 = sbr.rel (0) target = $region13
  $region12: #{linear_forward.1} parent=0 // pred_region
    _
  $region13: #{linear_forward.1} parent=0 // pred_fallthru
    _
  %v18 = vld [vmem:[%s0] sm:$0x1]
  %v19 = vld [vmem:[#allocation2] sm:$0x1]
  %21 = vset.pattern.permute.xlu0 0
  %22 = vperm.xlu0 %21, %v19
  %v23 = vpop.permute.xlu0 %22
  %v25 = vlaneseq
  %v26 = vshrl.u32 %v25, 7
  %v27 = vsub.s32 0, %v26
  %v28 = vrot.slane %v23, %v27
  %v29 = vmul.f32 %v18, %v28
  %v30 = vld [vmem:[#allocation3] sm:$0x1]
  %32 = vset.pattern.permute.xlu0 0
  %33 = vperm.xlu0 %32, %v30
  %v34 = vpop.permute.xlu0 %33
  %v36 = vlaneseq
  %v37 = vshrl.u32 %v36, 7
  %v38 = vsub.s32 0, %v37
  %v39 = vrot.slane %v34, %v38
  %v40 = vadd.f32 %v29, %v39
  %41 = vst [vmem:[%s3] sm:$0x1] %v40
  // Predicated region
  $region14: #{linear_forward.1} parent=0 // pred_check
    _
  $region15: #{linear_forward.1} parent=0 // pred_check_branch
    %43 = sbr.rel (0) target = $region17
  $region16: #{linear_forward.1} parent=0 // pred_region
    _
  $region17: #{linear_forward.1} parent=0 // pred_fallthru
    _
  // Predicated region
  $region18: #{linear_forward.1} parent=0 // pred_check
    _
  $region19: #{linear_forward.1} parent=0 // pred_check_branch
    %45 = sbr.rel (0) target = $region21
  $region20: #{linear_forward.1} parent=0 // pred_region
    _
  $region21: #{linear_forward.1} parent=0 // pred_fallthru
    _

</llo_original>
